<compile_context>
chip_gen: v5e
topology: v5e:2x2
jax: 0.10.0
libtpu: 0.0.40
codegen_flags: <defaults>
</compile_context>

<pallas_src>
import functools

import jax
import jax.numpy as jnp
from jax.experimental import pallas as pl
from jax.experimental.pallas import tpu as pltpu


def _round_up(x, m):
    return ((x + m - 1) // m) * m


def _uncertainty_loss_kernel(gaze_ref, pseudo_ref, lamda_ref, out_ref,
                             s1_ref, s2_ref, sa_ref, *,
                             total, d, tn, inv_n, inv_nm1, inv_d, inv_nd):
    i = pl.program_id(0)
    num_chunks = tn // 128

    # lane index / dimension-of-lane (d is a power of two since d | 128)
    lane = jax.lax.broadcasted_iota(jnp.int32, (1, 128), 1)
    lane_d = lane & (d - 1)

    # alternating pseudo row: p_row[lane] = pseudo[lane % d]  (one vreg)
    p_row = jnp.full((1, 128), pseudo_ref[0], dtype=jnp.float32)
    for dd in range(1, d):
        p_row = jnp.where(lane_d == dd, pseudo_ref[dd], p_row)

    @pl.when(i == 0)
    def _init():
        s1_ref[...] = jnp.zeros_like(s1_ref)
        s2_ref[...] = jnp.zeros_like(s2_ref)
        sa_ref[...] = jnp.zeros_like(sa_ref)

    base = i * tn  # flat-element offset of this grid step

    # Fold the (1, tn) tile into (1, 128) per-lane accumulators with pure VALU
    # adds; the garbage lanes of the (possibly partial) last block are masked
    # against the true element count `total`.
    def chunk_body(c, carry):
        s1, s2, sa = carry
        start = pl.multiple_of(c * 128, 128)
        v = gaze_ref[:, pl.ds(start, 128)].astype(jnp.float32)   # (1, 128)
        valid = (base + start + lane) < total
        diff = jnp.where(valid, v - p_row, 0.0)
        return (s1 + diff, s2 + diff * diff, sa + jnp.abs(diff))

    s1, s2, sa = jax.lax.fori_loop(
        0, num_chunks, chunk_body,
        (s1_ref[...], s2_ref[...], sa_ref[...]),
        unroll=min(num_chunks, 8))
    s1_ref[...] = s1
    s2_ref[...] = s2
    sa_ref[...] = sa

    @pl.when(i == pl.num_programs(0) - 1)
    def _finalize():
        std_sum = jnp.zeros((1, 1), jnp.float32)
        ps_sum = jnp.zeros((1, 1), jnp.float32)
        for dd in range(d):  # d tiny single-vreg lane reductions, once total
            msk = lane_d == dd
            s1_d = jnp.sum(jnp.where(msk, s1, 0.0), axis=1, keepdims=True)
            s2_d = jnp.sum(jnp.where(msk, s2, 0.0), axis=1, keepdims=True)
            sa_d = jnp.sum(jnp.where(msk, sa, 0.0), axis=1, keepdims=True)
            # shift-invariant unbiased variance: var(g) = var(g - pseudo);
            # clamp at 0 against catastrophic cancellation.
            var_d = jnp.maximum((s2_d - s1_d * s1_d * inv_n) * inv_nm1, 0.0)
            std_sum = std_sum + jnp.sqrt(var_d)
            ps_sum = ps_sum + sa_d * jax.lax.rsqrt(var_d)
        loss = std_sum * inv_d + lamda_ref[0] * (ps_sum * inv_nd)
        out_ref[0] = loss[0, 0]


def uncertainty_w_pseudo_label_loss(gaze, pseudo, lamda_pseudo=1e-4, *,
                                    tn_max=65536):
    """gaze: (N, D) float array, pseudo: (D,) float array. Returns scalar f32."""
    n, d = gaze.shape
    # TODO(synk): lane-interleaved layout assumes D | 128 (true for gaze D=2);
    # other D would need a different lane->dimension mapping.
    assert 128 % d == 0, "gaze dimension must divide 128"

    m = n * d
    gaze_flat = gaze.reshape(1, m)                 # free row-major reshape
    pseudo_smem = pseudo.astype(jnp.float32).reshape(d)
    lamda = jnp.asarray([lamda_pseudo], dtype=jnp.float32)

    # Big lane tiles: single grid step for typical inputs; cap keeps the
    # double-buffered block well under v7x's scoped VMEM.
    tn = min(_round_up(m, 128), _round_up(tn_max, 128))
    grid = (pl.cdiv(m, tn),)

    kernel = functools.partial(
        _uncertainty_loss_kernel,
        total=m, d=d, tn=tn,
        inv_n=1.0 / n,
        inv_nm1=(1.0 / (n - 1)) if n > 1 else float("nan"),  # n==1 -> NaN (matches torch)
        inv_d=1.0 / d,
        inv_nd=1.0 / m,
    )

    out = pl.pallas_call(
        kernel,
        out_shape=jax.ShapeDtypeStruct((1,), jnp.float32),
        grid=grid,
        in_specs=[
            pl.BlockSpec((1, tn), lambda i: (0, i)),                  # gaze tile
            pl.BlockSpec(memory_space=pltpu.MemorySpace.SMEM),        # pseudo (D scalars)
            pl.BlockSpec(memory_space=pltpu.MemorySpace.SMEM),        # lamda scalar
        ],
        out_specs=pl.BlockSpec(memory_space=pltpu.MemorySpace.SMEM),  # scalar loss
        scratch_shapes=[
            pltpu.VMEM((1, 128), jnp.float32),   # per-lane sum(g - p)
            pltpu.VMEM((1, 128), jnp.float32),   # per-lane sum((g - p)^2)
            pltpu.VMEM((1, 128), jnp.float32),   # per-lane sum|g - p|
        ],
        compiler_params=pltpu.CompilerParams(
            dimension_semantics=("arbitrary",)),
    )(gaze_flat, pseudo_smem, lamda)
    return out[0]


def _reference(gaze, pseudo, lamda_pseudo=1e-4):
    std = jnp.std(gaze, axis=0, ddof=1)
    return jnp.mean(std) + lamda_pseudo * jnp.mean(
        jnp.abs(gaze - pseudo[None, :]) / std
    )


if __name__ == "__main__":
    key = jax.random.PRNGKey(0)
    k1, k2, k3 = jax.random.split(key, 3)

    # small case: batch of 8 gaze predictions, 2-D gaze (pitch, yaw)
    #   -> m=16, one grid step, one 128-lane chunk, tail masking active
    gaze = jax.random.normal(k1, (8, 2), dtype=jnp.float32)
    pseudo = jax.random.normal(k2, (2,), dtype=jnp.float32)

    loss = uncertainty_w_pseudo_label_loss(gaze, pseudo, lamda_pseudo=1e-4)
    loss = jax.block_until_ready(loss)
    ref = _reference(gaze, pseudo, lamda_pseudo=1e-4)
    assert jnp.allclose(loss, ref, rtol=1e-4, atol=1e-6), (loss, ref)

    # larger case: m=1400 -> single step (tn=1408), 11 chunks + tail masking
    gaze_big = jax.random.normal(k3, (700, 2), dtype=jnp.float32)
    loss_big = uncertainty_w_pseudo_label_loss(gaze_big, pseudo, lamda_pseudo=1e-4)
    loss_big = jax.block_until_ready(loss_big)
    ref_big = _reference(gaze_big, pseudo, lamda_pseudo=1e-4)
    assert jnp.allclose(loss_big, ref_big, rtol=1e-4, atol=1e-6), (loss_big, ref_big)

    # same data through the multi-grid-step path (carried accumulators):
    # tn_max=256 -> grid of 6 steps, last step partially masked
    loss_ms = uncertainty_w_pseudo_label_loss(gaze_big, pseudo,
                                              lamda_pseudo=1e-4, tn_max=256)
    loss_ms = jax.block_until_ready(loss_ms)
    assert jnp.allclose(loss_ms, ref_big, rtol=1e-4, atol=1e-6), (loss_ms, ref_big)

    print("KERNEL_OK")
</pallas_src>

<mosaic_0001>
module attributes {stable_mosaic.version = 11 : i64} {
  func.func @_uncertainty_loss_kernel(%arg0: i32, %arg1: memref<1x128xf32, #tpu.memory_space<vmem>>, %arg2: memref<2xf32, #tpu.memory_space<smem>>, %arg3: memref<1xf32, #tpu.memory_space<smem>>, %arg4: memref<1xf32, #tpu.memory_space<smem>>, %arg5: memref<1x128xf32, #tpu.memory_space<vmem>>, %arg6: memref<1x128xf32, #tpu.memory_space<vmem>>, %arg7: memref<1x128xf32, #tpu.memory_space<vmem>>) attributes {dimension_semantics = [#tpu.dimension_semantics<arbitrary>], iteration_bounds = array<i64: 1>, scalar_prefetch = 0 : i64, scratch_operands = 3 : i64, tpu.core_type = #tpu.core_type<tc>, window_params = [{transform_indices = @transform_0, window_bounds = array<i64: 1, 128>}, {transform_indices = @transform_1, window_bounds = array<i64: 2>}, {transform_indices = @transform_2, window_bounds = array<i64: 1>}, {transform_indices = @transform_3, window_bounds = array<i64: 1>}]} {
    %0 = tpu.iota {dimensions = array<i32: 1>} : vector<1x128xi32>
    %c1_i32 = arith.constant 1 : i32
    %1 = vector.broadcast %c1_i32 : i32 to vector<1x128xi32>
    %2 = arith.andi %0, %1 : vector<1x128xi32>
    %c0 = arith.constant 0 : index
    %3 = memref.load %arg2[%c0] : memref<2xf32, #tpu.memory_space<smem>>
    %4 = vector.broadcast %3 : f32 to vector<1x128xf32>
    %c1_i32_0 = arith.constant 1 : i32
    %5 = vector.broadcast %c1_i32_0 : i32 to vector<1x128xi32>
    %6 = arith.cmpi eq, %2, %5 : vector<1x128xi32>
    %c1 = arith.constant 1 : index
    %7 = memref.load %arg2[%c1] : memref<2xf32, #tpu.memory_space<smem>>
    %8 = vector.broadcast %7 : f32 to vector<1x128xf32>
    %9 = arith.select %6, %8, %4 : vector<1x128xi1>, vector<1x128xf32>
    %c0_i32 = arith.constant 0 : i32
    %10 = arith.cmpi eq, %arg0, %c0_i32 : i32
    %11 = arith.extui %10 : i1 to i32
    %c0_i32_1 = arith.constant 0 : i32
    %12 = arith.cmpi ne, %11, %c0_i32_1 : i32
    scf.if %12 {
      %cst_20 = arith.constant 0.000000e+00 : f32
      %40 = vector.broadcast %cst_20 : f32 to vector<1x128xf32>
      %c0_21 = arith.constant 0 : index
      %c0_22 = arith.constant 0 : index
      %41 = vector.load %arg5[%c0_21, %c0_22] : memref<1x128xf32, #tpu.memory_space<vmem>>, vector<1x128xf32>
      tpu.vector_store %arg5[%c0_21, %c0_22], %40 {strides = array<i32>} : memref<1x128xf32, #tpu.memory_space<vmem>>, vector<1x128xf32>,
      %cst_23 = arith.constant 0.000000e+00 : f32
      %42 = vector.broadcast %cst_23 : f32 to vector<1x128xf32>
      %c0_24 = arith.constant 0 : index
      %c0_25 = arith.constant 0 : index
      %43 = vector.load %arg6[%c0_24, %c0_25] : memref<1x128xf32, #tpu.memory_space<vmem>>, vector<1x128xf32>
      tpu.vector_store %arg6[%c0_24, %c0_25], %42 {strides = array<i32>} : memref<1x128xf32, #tpu.memory_space<vmem>>, vector<1x128xf32>,
      %cst_26 = arith.constant 0.000000e+00 : f32
      %44 = vector.broadcast %cst_26 : f32 to vector<1x128xf32>
      %c0_27 = arith.constant 0 : index
      %c0_28 = arith.constant 0 : index
      %45 = vector.load %arg7[%c0_27, %c0_28] : memref<1x128xf32, #tpu.memory_space<vmem>>, vector<1x128xf32>
      tpu.vector_store %arg7[%c0_27, %c0_28], %44 {strides = array<i32>} : memref<1x128xf32, #tpu.memory_space<vmem>>, vector<1x128xf32>,
    } else {
    }
    %c128_i32 = arith.constant 128 : i32
    %13 = arith.muli %arg0, %c128_i32 : i32
    %c0_2 = arith.constant 0 : index
    %c0_3 = arith.constant 0 : index
    %14 = vector.load %arg5[%c0_2, %c0_3] : memref<1x128xf32, #tpu.memory_space<vmem>>, vector<1x128xf32>
    %c0_4 = arith.constant 0 : index
    %c0_5 = arith.constant 0 : index
    %15 = vector.load %arg6[%c0_4, %c0_5] : memref<1x128xf32, #tpu.memory_space<vmem>>, vector<1x128xf32>
    %c0_6 = arith.constant 0 : index
    %c0_7 = arith.constant 0 : index
    %16 = vector.load %arg7[%c0_6, %c0_7] : memref<1x128xf32, #tpu.memory_space<vmem>>, vector<1x128xf32>
    %c0_i32_8 = arith.constant 0 : i32
    %c128_i32_9 = arith.constant 128 : i32
    %17 = arith.muli %c0_i32_8, %c128_i32_9 : i32
    %18 = tpu.assume_multiple %17, 128 : i32
    %c0_10 = arith.constant 0 : index
    %19 = arith.index_cast %18 : i32 to index
    %20 = vector.load %arg1[%c0_10, %19] : memref<1x128xf32, #tpu.memory_space<vmem>>, vector<1x128xf32>
    %21 = arith.addi %13, %18 : i32
    %22 = vector.broadcast %21 : i32 to vector<1x128xi32>
    %23 = arith.addi %22, %0 : vector<1x128xi32>
    %c16_i32 = arith.constant 16 : i32
    %24 = vector.broadcast %c16_i32 : i32 to vector<1x128xi32>
    %25 = arith.cmpi slt, %23, %24 : vector<1x128xi32>
    %26 = arith.subf %20, %9 : vector<1x128xf32>
    %cst = arith.constant 0.000000e+00 : f32
    %27 = vector.broadcast %cst : f32 to vector<1x128xf32>
    %28 = arith.select %25, %26, %27 : vector<1x128xi1>, vector<1x128xf32>
    %29 = arith.addf %14, %28 : vector<1x128xf32>
    %30 = arith.mulf %28, %28 : vector<1x128xf32>
    %31 = arith.addf %15, %30 : vector<1x128xf32>
    %32 = math.absf %28 : vector<1x128xf32>
    %33 = arith.addf %16, %32 : vector<1x128xf32>
    %c1_i32_11 = arith.constant 1 : i32
    %c0_12 = arith.constant 0 : index
    %c0_13 = arith.constant 0 : index
    %34 = vector.load %arg5[%c0_12, %c0_13] : memref<1x128xf32, #tpu.memory_space<vmem>>, vector<1x128xf32>
    tpu.vector_store %arg5[%c0_12, %c0_13], %29 {strides = array<i32>} : memref<1x128xf32, #tpu.memory_space<vmem>>, vector<1x128xf32>,
    %c0_14 = arith.constant 0 : index
    %c0_15 = arith.constant 0 : index
    %35 = vector.load %arg6[%c0_14, %c0_15] : memref<1x128xf32, #tpu.memory_space<vmem>>, vector<1x128xf32>
    tpu.vector_store %arg6[%c0_14, %c0_15], %31 {strides = array<i32>} : memref<1x128xf32, #tpu.memory_space<vmem>>, vector<1x128xf32>,
    %c0_16 = arith.constant 0 : index
    %c0_17 = arith.constant 0 : index
    %36 = vector.load %arg7[%c0_16, %c0_17] : memref<1x128xf32, #tpu.memory_space<vmem>>, vector<1x128xf32>
    tpu.vector_store %arg7[%c0_16, %c0_17], %33 {strides = array<i32>} : memref<1x128xf32, #tpu.memory_space<vmem>>, vector<1x128xf32>,
    %c0_i32_18 = arith.constant 0 : i32
    %37 = arith.cmpi eq, %arg0, %c0_i32_18 : i32
    %38 = arith.extui %37 : i1 to i32
    %c0_i32_19 = arith.constant 0 : i32
    %39 = arith.cmpi ne, %38, %c0_i32_19 : i32
    scf.if %39 {
      %cst_20 = arith.constant 0.000000e+00 : f32
      %40 = vector.broadcast %cst_20 : f32 to vector<1x1xf32>
      %cst_21 = arith.constant 0.000000e+00 : f32
      %41 = vector.broadcast %cst_21 : f32 to vector<1x1xf32>
      %c0_i32_22 = arith.constant 0 : i32
      %42 = vector.broadcast %c0_i32_22 : i32 to vector<1x128xi32>
      %43 = arith.cmpi eq, %2, %42 : vector<1x128xi32>
      %cst_23 = arith.constant 0.000000e+00 : f32
      %44 = vector.broadcast %cst_23 : f32 to vector<1x128xf32>
      %45 = arith.select %43, %29, %44 : vector<1x128xi1>, vector<1x128xf32>
      %cst_24 = arith.constant dense<0.000000e+00> : vector<1xf32>
      %46 = vector.multi_reduction <add>, %45, %cst_24 [1] : vector<1x128xf32> to vector<1xf32>
      %47 = vector.shape_cast %46 : vector<1xf32> to vector<1x1xf32>
      %cst_25 = arith.constant 0.000000e+00 : f32
      %48 = vector.broadcast %cst_25 : f32 to vector<1x128xf32>
      %49 = arith.select %43, %31, %48 : vector<1x128xi1>, vector<1x128xf32>
      %cst_26 = arith.constant dense<0.000000e+00> : vector<1xf32>
      %50 = vector.multi_reduction <add>, %49, %cst_26 [1] : vector<1x128xf32> to vector<1xf32>
      %51 = vector.shape_cast %50 : vector<1xf32> to vector<1x1xf32>
      %cst_27 = arith.constant 0.000000e+00 : f32
      %52 = vector.broadcast %cst_27 : f32 to vector<1x128xf32>
      %53 = arith.select %43, %33, %52 : vector<1x128xi1>, vector<1x128xf32>
      %cst_28 = arith.constant dense<0.000000e+00> : vector<1xf32>
      %54 = vector.multi_reduction <add>, %53, %cst_28 [1] : vector<1x128xf32> to vector<1xf32>
      %55 = vector.shape_cast %54 : vector<1xf32> to vector<1x1xf32>
      %56 = arith.mulf %47, %47 : vector<1x1xf32>
      %cst_29 = arith.constant 1.250000e-01 : f32
      %57 = vector.broadcast %cst_29 : f32 to vector<1x1xf32>
      %58 = arith.mulf %56, %57 : vector<1x1xf32>
      %59 = arith.subf %51, %58 : vector<1x1xf32>
      %cst_30 = arith.constant 0.142857149 : f32
      %60 = vector.broadcast %cst_30 : f32 to vector<1x1xf32>
      %61 = arith.mulf %59, %60 : vector<1x1xf32>
      %cst_31 = arith.constant 0.000000e+00 : f32
      %62 = vector.broadcast %cst_31 : f32 to vector<1x1xf32>
      %63 = arith.maximumf %61, %62 : vector<1x1xf32>
      %64 = math.sqrt %63 : vector<1x1xf32>
      %65 = arith.addf %40, %64 : vector<1x1xf32>
      %66 = math.rsqrt %63 : vector<1x1xf32>
      %67 = arith.mulf %55, %66 : vector<1x1xf32>
      %68 = arith.addf %41, %67 : vector<1x1xf32>
      %c1_i32_32 = arith.constant 1 : i32
      %69 = vector.broadcast %c1_i32_32 : i32 to vector<1x128xi32>
      %70 = arith.cmpi eq, %2, %69 : vector<1x128xi32>
      %cst_33 = arith.constant 0.000000e+00 : f32
      %71 = vector.broadcast %cst_33 : f32 to vector<1x128xf32>
      %72 = arith.select %70, %29, %71 : vector<1x128xi1>, vector<1x128xf32>
      %cst_34 = arith.constant dense<0.000000e+00> : vector<1xf32>
      %73 = vector.multi_reduction <add>, %72, %cst_34 [1] : vector<1x128xf32> to vector<1xf32>
      %74 = vector.shape_cast %73 : vector<1xf32> to vector<1x1xf32>
      %cst_35 = arith.constant 0.000000e+00 : f32
      %75 = vector.broadcast %cst_35 : f32 to vector<1x128xf32>
      %76 = arith.select %70, %31, %75 : vector<1x128xi1>, vector<1x128xf32>
      %cst_36 = arith.constant dense<0.000000e+00> : vector<1xf32>
      %77 = vector.multi_reduction <add>, %76, %cst_36 [1] : vector<1x128xf32> to vector<1xf32>
      %78 = vector.shape_cast %77 : vector<1xf32> to vector<1x1xf32>
      %cst_37 = arith.constant 0.000000e+00 : f32
      %79 = vector.broadcast %cst_37 : f32 to vector<1x128xf32>
      %80 = arith.select %70, %33, %79 : vector<1x128xi1>, vector<1x128xf32>
      %cst_38 = arith.constant dense<0.000000e+00> : vector<1xf32>
      %81 = vector.multi_reduction <add>, %80, %cst_38 [1] : vector<1x128xf32> to vector<1xf32>
      %82 = vector.shape_cast %81 : vector<1xf32> to vector<1x1xf32>
      %83 = arith.mulf %74, %74 : vector<1x1xf32>
      %cst_39 = arith.constant 1.250000e-01 : f32
      %84 = vector.broadcast %cst_39 : f32 to vector<1x1xf32>
      %85 = arith.mulf %83, %84 : vector<1x1xf32>
      %86 = arith.subf %78, %85 : vector<1x1xf32>
      %cst_40 = arith.constant 0.142857149 : f32
      %87 = vector.broadcast %cst_40 : f32 to vector<1x1xf32>
      %88 = arith.mulf %86, %87 : vector<1x1xf32>
      %cst_41 = arith.constant 0.000000e+00 : f32
      %89 = vector.broadcast %cst_41 : f32 to vector<1x1xf32>
      %90 = arith.maximumf %88, %89 : vector<1x1xf32>
      %91 = math.sqrt %90 : vector<1x1xf32>
      %92 = arith.addf %65, %91 : vector<1x1xf32>
      %93 = math.rsqrt %90 : vector<1x1xf32>
      %94 = arith.mulf %82, %93 : vector<1x1xf32>
      %95 = arith.addf %68, %94 : vector<1x1xf32>
      %cst_42 = arith.constant 5.000000e-01 : f32
      %96 = vector.broadcast %cst_42 : f32 to vector<1x1xf32>
      %97 = arith.mulf %92, %96 : vector<1x1xf32>
      %c0_43 = arith.constant 0 : index
      %98 = memref.load %arg3[%c0_43] : memref<1xf32, #tpu.memory_space<smem>>
      %cst_44 = arith.constant 6.250000e-02 : f32
      %99 = vector.broadcast %cst_44 : f32 to vector<1x1xf32>
      %100 = arith.mulf %95, %99 : vector<1x1xf32>
      %101 = vector.broadcast %98 : f32 to vector<1x1xf32>
      %102 = arith.mulf %101, %100 : vector<1x1xf32>
      %103 = arith.addf %97, %102 : vector<1x1xf32>
      %104 = vector.extract %103[0, 0] : f32 from vector<1x1xf32>
      %c0_45 = arith.constant 0 : index
      %105 = memref.load %arg4[%c0_45] : memref<1xf32, #tpu.memory_space<smem>>
      memref.store %104, %arg4[%c0_45] : memref<1xf32, #tpu.memory_space<smem>>
    } else {
    }
    return
  }
  func.func @transform_0(%arg0: i32) -> (i32, i32) {
    %c0_i32 = arith.constant 0 : i32
    %c0_i32_0 = arith.constant 0 : i32
    return %c0_i32, %arg0 : i32, i32
  }
  func.func @transform_1(%arg0: i32) -> i32 {
    %c0_i32 = arith.constant 0 : i32
    %c0_i32_0 = arith.constant 0 : i32
    return %c0_i32 : i32
  }
  func.func @transform_2(%arg0: i32) -> i32 {
    %c0_i32 = arith.constant 0 : i32
    %c0_i32_0 = arith.constant 0 : i32
    return %c0_i32 : i32
  }
  func.func @transform_3(%arg0: i32) -> i32 {
    %c0_i32 = arith.constant 0 : i32
    %c0_i32_0 = arith.constant 0 : i32
    return %c0_i32 : i32
  }
}

</mosaic_0001>

<llo_original>
// kernel: tpu_custom_call.1
$region0: #{tpu_custom_call.1}
  #allocation0 [shape = 'u32[]', space=smem, size = 0x4, offset = 0x4, fixed_abs, tag = 'smem constant byte address 0x4 - core index']
  #allocation1 [shape = 'u32[72,128]{1,0:T(1,128)}', space=vmem, size = 0x9000, scoped, tag = 'internal scratch']
  #allocation2 [shape = 'f32[1,128]{1,0:T(1,128)}', space=vmem, size = 0x200, scoped, tag = 'scratch operand']
  #allocation3 [shape = 'f32[1,128]{1,0:T(1,128)}', space=vmem, size = 0x200, scoped, tag = 'scratch operand']
  #allocation4 [shape = 'f32[1,128]{1,0:T(1,128)}', space=vmem, size = 0x200, scoped, tag = 'scratch operand']
  #allocation5 [shape = 'f32[1]{0:T(128)S(6)}', space=smem, size = 0x200, scoped, tag = 'scoped memory for tpu_custom_call.1']
  %s0 = inlined_call_operand.vmem [shape: f32[1,16], index: 0, kind: input, shape index: {}]
  %s1 = inlined_call_operand.vmem [shape: f32[2], index: 1, kind: input, shape index: {}]
  %s2 = inlined_call_operand.<no memory space> [shape: f32[1], index: 2, kind: input, shape index: {}]
  %s3 = inlined_call_operand.hbm [shape: f32[1], index: 3, kind: output, shape index: {}]
  %s4 = sld [smem:[#allocation0]]
  $region34: #{tpu_custom_call.1} parent=0
    _
  %s6 = ssub.s32 1, %s4
  %s7 = scalar_select 0, %s6, %s4
  %8 = sst [smem:[#allocation5]] %s2
  $region1: #{tpu_custom_call.1} parent=0
    #allocation6 [shape = 'u8[512]{0}', space=smem, size = 0x200, scoped, tag = 'input window, operand 1, single buffered']
    #allocation7 [shape = 's32[1]{0}', space=sflag, size = 0x4, scoped, tag = 'scoped memory for tpu_custom_call.1']
    #allocation8 [shape = 's32[1]{0}', space=sflag, size = 0x4, scoped, tag = 'scoped memory for tpu_custom_call.1']
    #allocation9 [shape = 'u8[512]{0}', space=smem, size = 0x200, scoped, tag = 'output window, operand 0, single buffered']
    %9 = vsyncpa [#allocation8], 0
    %10 = vsyncpa [#allocation7], 0
    // Predicated region
    $region2: #{tpu_custom_call.1} parent=1 // pred_check
      _
    $region3: #{tpu_custom_call.1} parent=1 // pred_check_branch
      %12 = sbr.rel (0) target = $region5
    $region4: #{tpu_custom_call.1} parent=1 // pred_region
      _
    $region5: #{tpu_custom_call.1} parent=1 // pred_fallthru
      _
    // Predicated region
    $region6: #{tpu_custom_call.1} parent=1 // pred_check
      _
    $region7: #{tpu_custom_call.1} parent=1 // pred_check_branch
      %14 = sbr.rel (0) target = $region9
    $region8: #{tpu_custom_call.1} parent=1 // pred_region
      %16 = vsyncadd [#allocation8], 0
      %s18 = sshll.u32 %s1, 4
      %s19 = int_to_ptr.vmem [resolvable:$true] %s18
      %21 = dma.vmem_to_smem %s19, 16, [#allocation6], [#allocation8]
    $region9: #{tpu_custom_call.1} parent=1 // pred_fallthru
      _
    // Predicated region
    $region10: #{tpu_custom_call.1} parent=1 // pred_check
      _
    $region11: #{tpu_custom_call.1} parent=1 // pred_check_branch
      %23 = sbr.rel (0) target = $region13
    $region12: #{tpu_custom_call.1} parent=1 // pred_region
      _
    $region13: #{tpu_custom_call.1} parent=1 // pred_fallthru
      _
    // Predicated region
    $region14: #{tpu_custom_call.1} parent=1 // pred_check
      _
    $region15: #{tpu_custom_call.1} parent=1 // pred_check_branch
      %25 = sbr.rel (0) target = $region17
    $region16: #{tpu_custom_call.1} parent=1 // pred_region
      %27 = dma.done [#allocation8], 16
    $region17: #{tpu_custom_call.1} parent=1 // pred_fallthru
      _
    %28 = sfence
    %v29 = vlaneseq
    %v30 = vand.u32 %v29, 127
    %v31 = vand.u32 %v30, 1
    %s32 = sld [smem:[#allocation6]]
    %v33 = vstv %s32
    %vm34 = vcmp.eq.s32.totalorder %v31, 1
    %s35 = sld [smem:[#allocation6 + $0x1]]
    %v36 = vstv %s35
    %v37 = vsel %vm34, %v36, %v33
    %p38 = scmp.eq.s32.totalorder 0, 0
    // Predicated region
    $region18: #{tpu_custom_call.1} parent=1 // pred_check
      %p39 = pneg %p38
    $region19: #{tpu_custom_call.1} parent=1 // pred_check_branch
      %41 = sbr.rel (%p39) target = $region21
    $region20: #{tpu_custom_call.1} parent=1 // pred_region
      %42 = vst [vmem:[#allocation2] sm:$0x1] 0.0
      %43 = vst [vmem:[#allocation3] sm:$0x1] 0.0
      %44 = vst [vmem:[#allocation4] sm:$0x1] 0.0
    $region21: #{tpu_custom_call.1} parent=1 // pred_fallthru
      _
    %s45 = smul.u32 0, 128
    %v46 = vld [vmem:[#allocation2] sm:$0x1]
    %v47 = vld [vmem:[#allocation3] sm:$0x1]
    %v48 = vld [vmem:[#allocation4] sm:$0x1]
    %v49 = vld [vmem:[%s0] sm:$0x1]
    %s50 = sadd.s32 %s45, 0
    %v51 = vstv %s50
    %v52 = vadd.s32 %v51, %v30
    %vm53 = vcmp.lt.s32.totalorder %v52, 16
    %v54 = vsub.f32 %v49, %v37
    %v55 = vsel %vm53, %v54, 0.0
    %v56 = vadd.f32 %v46, %v55
    %v57 = vmul.f32 %v55, %v55
    %v58 = vadd.f32 %v47, %v57
    %v59 = vand.u32 2147483647, %v55
    %v60 = vadd.f32 %v48, %v59
    %61 = vst [vmem:[#allocation2] sm:$0x1] %v56
    %62 = vst [vmem:[#allocation3] sm:$0x1] %v58
    %63 = vst [vmem:[#allocation4] sm:$0x1] %v60
    // Predicated region
    $region22: #{tpu_custom_call.1} parent=1 // pred_check
      %p64 = pneg %p38
    $region23: #{tpu_custom_call.1} parent=1 // pred_check_branch
      %66 = sbr.rel (%p64) target = $region25
    $region24: #{tpu_custom_call.1} parent=1 // pred_region
      %vm67 = vcmp.eq.s32.totalorder %v31, 0
      %v68 = vsel %vm67, %v56, 0.0
      %vm69 = vcmask 1040384
      %v70 = vsel %vm69, %v68, 0.0
      %71 = vadd.xlane.f32.xlu0 %v70
      %v72 = vpop.xlane.xlu0 %71
      %v73 = vsel %vm67, %v58, 0.0
      %v74 = vsel %vm69, %v73, 0.0
      %75 = vadd.xlane.f32.xlu0 %v74
      %v76 = vpop.xlane.xlu0 %75
      %v77 = vsel %vm67, %v60, 0.0
      %v78 = vsel %vm69, %v77, 0.0
      %79 = vadd.xlane.f32.xlu0 %v78
      %v80 = vpop.xlane.xlu0 %79
      %v81 = vmul.f32 %v72, %v72
      %v82 = vmul.f32 %v81, 0.125
      %v83 = vsub.f32 %v76, %v82
      %v84 = vmul.f32 %v83, 0.14285715
      %v85 = vmax.f32 %v84, 0.0
      %v86 = vrsqrt.pop %v85
      %v87 = vmul.f32 %v86, %v85
      %v88 = vmul.f32 %v87, %v86
      %v89 = vmul.f32 0.5, %v88
      %v90 = vsub.f32 1.5, %v89
      %v91 = vmul.f32 %v86, %v90
      %v92 = vmul.f32 %v85, %v91
      %vm93 = vcmp.eq.f32.partialorder %v85, inf
      %v94 = vsel %vm93, %v85, %v92
      %vm95 = vcmp.eq.f32.partialorder %v85, 0.0
      %v96 = vand.u32 %v85, 2147483648
      %v97 = vsel %vm95, %v96, %v94
      %v98 = vadd.f32 %v97, 0.0
      %v99 = vrsqrt.pop %v85
      %v100 = vmul.f32 %v99, %v85
      %v101 = vmul.f32 %v100, %v99
      %v102 = vmul.f32 0.5, %v101
      %v103 = vsub.f32 1.5, %v102
      %v104 = vmul.f32 %v99, %v103
      %vm105 = vweird.f32 %v85
      %vm106 = vweird.f32 %v99
      %vm107 = vmor %vm105, %vm106
      %v108 = vsel %vm107, %v99, %v104
      %v109 = vmul.f32 %v80, %v108
      %v110 = vadd.f32 %v109, 0.0
      %v111 = vsel %vm34, %v56, 0.0
      %v112 = vsel %vm69, %v111, 0.0
      %113 = vadd.xlane.f32.xlu0 %v112
      %v114 = vpop.xlane.xlu0 %113
      %v115 = vsel %vm34, %v58, 0.0
      %v116 = vsel %vm69, %v115, 0.0
      %117 = vadd.xlane.f32.xlu0 %v116
      %v118 = vpop.xlane.xlu0 %117
      %v119 = vsel %vm34, %v60, 0.0
      %v120 = vsel %vm69, %v119, 0.0
      %121 = vadd.xlane.f32.xlu0 %v120
      %v122 = vpop.xlane.xlu0 %121
      %v123 = vmul.f32 %v114, %v114
      %v124 = vmul.f32 %v123, 0.125
      %v125 = vsub.f32 %v118, %v124
      %v126 = vmul.f32 %v125, 0.14285715
      %v127 = vmax.f32 %v126, 0.0
      %v128 = vrsqrt.pop %v127
      %v129 = vmul.f32 %v128, %v127
      %v130 = vmul.f32 %v129, %v128
      %v131 = vmul.f32 0.5, %v130
      %v132 = vsub.f32 1.5, %v131
      %v133 = vmul.f32 %v128, %v132
      %v134 = vmul.f32 %v127, %v133
      %vm135 = vcmp.eq.f32.partialorder %v127, inf
      %v136 = vsel %vm135, %v127, %v134
      %vm137 = vcmp.eq.f32.partialorder %v127, 0.0
      %v138 = vand.u32 %v127, 2147483648
      %v139 = vsel %vm137, %v138, %v136
      %v140 = vadd.f32 %v98, %v139
      %v141 = vrsqrt.pop %v127
      %v142 = vmul.f32 %v141, %v127
      %v143 = vmul.f32 %v142, %v141
      %v144 = vmul.f32 0.5, %v143
      %v145 = vsub.f32 1.5, %v144
      %v146 = vmul.f32 %v141, %v145
      %vm147 = vweird.f32 %v127
      %vm148 = vweird.f32 %v141
      %vm149 = vmor %vm147, %vm148
      %v150 = vsel %vm149, %v141, %v146
      %v151 = vmul.f32 %v122, %v150
      %v152 = vadd.f32 %v110, %v151
      %v153 = vmul.f32 %v140, 0.5
      %s154 = sld [smem:[#allocation5]]
      %v155 = vmul.f32 %v152, 0.0625
      %v156 = vstv %s154
      %v157 = vmul.f32 %v156, %v155
      %v158 = vadd.f32 %v153, %v157
      %s159 = vtos %v158
      %s160 = scalar_lea.smem [#allocation9], 0
      %161 = sst [smem:[%s160]] %s159
    $region25: #{tpu_custom_call.1} parent=1 // pred_fallthru
      _
    // Predicated region
    $region26: #{tpu_custom_call.1} parent=1 // pred_check
      _
    $region27: #{tpu_custom_call.1} parent=1 // pred_check_branch
      %163 = sbr.rel (0) target = $region29
    $region28: #{tpu_custom_call.1} parent=1 // pred_region
      %165 = vsyncadd [#allocation7], 0
      %s167 = sshll.u32 %s3, 4
      %s168 = int_to_ptr.hbm [resolvable:$true] %s167
      %170 = dma.smem_to_hbm [#allocation9], 16, %s168, [#allocation7]
    $region29: #{tpu_custom_call.1} parent=1 // pred_fallthru
      _
    // Predicated region
    $region30: #{tpu_custom_call.1} parent=1 // pred_check
      _
    $region31: #{tpu_custom_call.1} parent=1 // pred_check_branch
      %172 = sbr.rel (0) target = $region33
    $region32: #{tpu_custom_call.1} parent=1 // pred_region
      %174 = dma.done [#allocation7], 16
    $region33: #{tpu_custom_call.1} parent=1 // pred_fallthru
      _
    %175 = sfence
    %176 = vsyncpa [#allocation7], 1
    %177 = vsyncpa [#allocation8], 1

</llo_original>
